<compile_context>
chip_gen: v5e
topology: v5e:2x2
jax: 0.10.0
libtpu: 0.0.40
codegen_flags: <defaults>
</compile_context>

<pallas_src>
import jax
import jax.numpy as jnp
from jax.experimental import pallas as pl
from jax.experimental.pallas import tpu as pltpu


def _round_up(x, m):
    return ((x + m - 1) // m) * m


def _vmem_capacity_bytes():
    """Best-effort per-core VMEM capacity; conservative fallback = v7x (64 MiB)."""
    try:
        info = pltpu.get_tpu_info()
        return int(getattr(info, "vmem_capacity_bytes", 64 * 1024 * 1024))
    except Exception:
        return 64 * 1024 * 1024


def _pick_tile(batch_size, n_fields, max_fc_dim, requested):
    """Pick the batch tile (lanes per grid step) and the VMEM limit."""
    b128 = _round_up(max(batch_size, 1), 128)
    tile = 8192 if requested is None else int(requested)
    tile = max(128, (min(tile, b128) // 128) * 128)
    # v7x megacore: keep >= 2 grid steps when the batch allows it so the "parallel"
    # batch axis can be sharded across both TensorCores.
    if b128 >= 256 and -(-b128 // tile) < 2:
        tile = _round_up(-(-b128 // 2), 128)
    # Per-generation VMEM budget: double-buffered (n_fields+2)-row i32/f32 tiles plus a
    # handful of live (max_fc_dim, tile) f32 activation temps.
    vmem_cap = _vmem_capacity_bytes()
    budget = vmem_cap // 4
    per_lane = 4 * (2 * (n_fields + 2) + 4 * max(max_fc_dim, 1))
    max_tile = max(128, (budget // per_lane // 128) * 128)
    tile = min(tile, max_tile)
    vmem_limit = int(min(vmem_cap // 2, 64 * 1024 * 1024))
    return tile, vmem_limit


# ----------------------------------------------------------------------------
# Pallas kernel
# ----------------------------------------------------------------------------
def _make_dnw_kernel(num_layers, n_fields, vocab, compute_dtype):
    """Kernel refs: (biases, fused0, W1^T..W_{L-2}^T, w_last, wide, feats, out)."""
    n_mid = max(num_layers - 2, 0)
    has_last = num_layers >= 2

    def kernel(*refs):
        b_ref = refs[0]                    # VMEM (1, L)               per-layer biases (resident)
        fused0_ref = refs[1]               # VMEM (nf, fc0, vocab)     (embedding @ W0_f)^T (resident)
        pos = 2
        mid_refs = refs[pos:pos + n_mid]   # VMEM (D_out, D_in)        transposed mid weights (resident)
        pos += n_mid
        if has_last:
            wlast_ref = refs[pos]          # VMEM (D_last, 1) f32      final weight column (resident)
            pos += 1
        wide_ref = refs[pos]               # VMEM (1, TILE_B)          wide part (already + bias)
        feats_ref = refs[pos + 1]          # VMEM (nf, TILE_B) int32   feature ids, batch on lanes
        out_ref = refs[pos + 2]            # VMEM (1, TILE_B)          lane-dense output tile

        tile_b = feats_ref.shape[1]

        # ---- embedding gather fused with layer 0: one-hot matmuls on the (idle) MXU ----
        sub_iota = jax.lax.broadcasted_iota(jnp.int32, (vocab, tile_b), 0)
        z = None
        for f in range(n_fields):
            onehot = (sub_iota == feats_ref[f:f + 1, :]).astype(jnp.float32)
            onehot = onehot.astype(compute_dtype)                     # (vocab, TILE_B)
            part = jnp.dot(fused0_ref[f], onehot,
                           preferred_element_type=jnp.float32)        # (fc0, TILE_B) f32
            z = part if z is None else z + part
        h = jnp.maximum(z + b_ref[0:1, 0:1], 0.0)                      # f32 activations

        # ---- middle layers: h <- relu(W_i^T @ h + b_i), batch stays on lanes ----
        for li, w_ref in enumerate(mid_refs):
            zi = jnp.dot(w_ref[...], h.astype(compute_dtype),
                         preferred_element_type=jnp.float32)
            h = jnp.maximum(zi + b_ref[0:1, li + 1:li + 2], 0.0)

        # ---- final fc_dim==1 layer: VPU broadcast-mul + sublane reduce (no M=1 matmul) ----
        if has_last:
            zl = jnp.sum(wlast_ref[...] * h, axis=0, keepdims=True)    # (1, TILE_B)
            h = jnp.maximum(zl + b_ref[0:1, num_layers - 1:num_layers], 0.0)

        out_ref[...] = jax.nn.sigmoid(wide_ref[...] + h)

    return kernel


# ----------------------------------------------------------------------------
# Wrapper
# ----------------------------------------------------------------------------
def deep_and_wide_pallas(batch_size, index, feats, values, params, *,
                         tile_b=None, compute_dtype=jnp.bfloat16,
                         onehot_index=True):
    """Pallas implementation of DeepAndWide.forward (encode='onehot')."""
    weights = params["weights"]        # (vocab, 1)
    embedding = params["embedding"]    # (vocab, emb_dim)
    bias = params["bias"]              # (1,)
    mats = params["mats"]              # list of (W (D_in, D_out), b (1, 1))

    num_layers = len(mats)
    assert num_layers >= 1
    assert mats[-1][0].shape[1] == 1, "final fc_dim must be 1 (matches view(-1) + add)"
    vocab, emb_dim = embedding.shape
    d0 = mats[0][0].shape[0]
    assert d0 % emb_dim == 0
    n_fields = d0 // emb_dim
    assert feats.shape[0] == batch_size * n_fields
    assert values.shape[0] == feats.shape[0]
    cdt = compute_dtype

    # ---- wide part: dense per-field reduce (exact scatter_add fallback) ----
    prod = (weights[feats, 0] * values).astype(jnp.float32)           # (N,)
    if onehot_index:
        # encode='onehot' layout: index == repeat(arange(B), n_fields)
        wide = prod.reshape(batch_size, n_fields).sum(axis=1)
    else:
        wide = jnp.zeros((batch_size,), jnp.float32).at[index].add(prod)
    wide = wide + bias[0]

    # ---- fuse layer 0 with the gather: T_f^T = (embedding @ W0_f)^T, tiny & resident ----
    w0 = mats[0][0].astype(jnp.float32)                                # (d0, fc0)
    fc0 = w0.shape[1]
    emb_f32 = embedding.astype(jnp.float32)
    fused0 = jnp.stack(
        [(emb_f32 @ w0[f * emb_dim:(f + 1) * emb_dim, :]).T for f in range(n_fields)],
        axis=0).astype(cdt)                                            # (nf, fc0, vocab)

    mid_ws = [mats[i][0].T.astype(cdt) for i in range(1, num_layers - 1)]
    last_ws = [mats[-1][0].astype(jnp.float32)] if num_layers >= 2 else []
    layer_bs = jnp.concatenate(
        [b.reshape(1) for (_, b) in mats]).reshape(1, num_layers).astype(jnp.float32)

    # ---- batch tiling (batch on lanes), per-generation sizing ----
    max_fc = max([fc0] + [w.shape[0] for w in mid_ws] + [1])
    tile, vmem_limit = _pick_tile(batch_size, n_fields, max_fc, tile_b)
    num_tiles = -(-batch_size // tile)
    b_pad = num_tiles * tile

    feats_t = feats.reshape(batch_size, n_fields).T.astype(jnp.int32)  # (nf, B) small relayout
    if b_pad != batch_size:
        feats_t = jnp.pad(feats_t, ((0, 0), (0, b_pad - batch_size)))
        wide = jnp.pad(wide, (0, b_pad - batch_size))
    wide2 = wide.reshape(1, b_pad)

    in_specs = [
        pl.BlockSpec((1, num_layers), lambda i: (0, 0)),               # biases (resident)
        pl.BlockSpec(fused0.shape, lambda i: (0, 0, 0)),               # fused emb@W0 (resident)
    ]
    for w in mid_ws:
        in_specs.append(pl.BlockSpec(w.shape, lambda i: (0, 0)))       # resident mid weight
    for w in last_ws:
        in_specs.append(pl.BlockSpec(w.shape, lambda i: (0, 0)))       # resident last column
    in_specs += [
        pl.BlockSpec((1, tile), lambda i: (0, i)),                     # wide tile
        pl.BlockSpec((n_fields, tile), lambda i: (0, i)),              # feats tile
    ]

    out = pl.pallas_call(
        _make_dnw_kernel(num_layers, n_fields, vocab, cdt),
        out_shape=jax.ShapeDtypeStruct((1, b_pad), jnp.float32),
        grid=(num_tiles,),
        in_specs=in_specs,
        out_specs=pl.BlockSpec((1, tile), lambda i: (0, i)),
        compiler_params=pltpu.CompilerParams(
            dimension_semantics=("parallel",),
            vmem_limit_bytes=vmem_limit),
    )(layer_bs, fused0, *mid_ws, *last_ws, wide2, feats_t)

    return out[0, :batch_size]                                         # (B,)


# ----------------------------------------------------------------------------
# Pure-JAX reference (mirrors the torch code exactly)
# ----------------------------------------------------------------------------
def deep_and_wide_ref(batch_size, index, feats, values, params):
    w_g = params["weights"][feats, 0]
    e_g = params["embedding"][feats]
    srcs = w_g * values
    first = jnp.zeros((batch_size,), jnp.float32).at[index].add(srcs) + params["bias"][0]
    h = e_g.reshape(batch_size, -1)
    for w_mat, b_mat in params["mats"]:
        h = jnp.maximum(h @ w_mat + b_mat[0, 0], 0.0)
    higher = h.reshape(-1)
    return jax.nn.sigmoid(first + higher)


# ----------------------------------------------------------------------------
# Deterministic parameter init (mirrors __init__ shapes)
# ----------------------------------------------------------------------------
def init_params(key, n_fields, embedding_dim, fc_dims, fake_input_dim=10):
    keys = jax.random.split(key, 2 + len(fc_dims))
    wb = (6.0 / (fake_input_dim + 1)) ** 0.5
    eb = (6.0 / (fake_input_dim + embedding_dim)) ** 0.5
    params = {
        "bias": jnp.zeros((1,), jnp.float32),
        "weights": jax.random.uniform(keys[0], (fake_input_dim, 1), jnp.float32, -wb, wb),
        "embedding": jax.random.uniform(
            keys[1], (fake_input_dim, embedding_dim), jnp.float32, -eb, eb),
        "mats": [],
    }
    dim = n_fields * embedding_dim
    for i, fc_dim in enumerate(fc_dims):
        bound = (6.0 / dim) ** 0.5  # kaiming_uniform, fan_in, relu gain
        w_mat = jax.random.uniform(keys[2 + i], (dim, fc_dim), jnp.float32, -bound, bound)
        b_mat = jnp.zeros((1, 1), jnp.float32)
        params["mats"].append((w_mat, b_mat))
        dim = fc_dim
    return params


# ----------------------------------------------------------------------------
if __name__ == "__main__":
    key = jax.random.PRNGKey(0)

    batch_size = 512           # 2 grid steps after the megacore >=2-tile cap
    n_fields = 6
    embedding_dim = 8
    fc_dims = [32, 16, 1]
    fake_input_dim = 10
    n = batch_size * n_fields

    k_param, k_feat, k_val = jax.random.split(key, 3)
    params = init_params(k_param, n_fields, embedding_dim, fc_dims, fake_input_dim)

    # onehot encoding: one active feature per (sample, field), rows ordered by sample.
    feats = jax.random.randint(k_feat, (n,), 0, fake_input_dim, dtype=jnp.int32)
    values = jax.random.uniform(k_val, (n,), jnp.float32)
    index = jnp.repeat(jnp.arange(batch_size, dtype=jnp.int32), n_fields)

    ref = deep_and_wide_ref(batch_size, index, feats, values, params)

    # f32 path: exact module precision.
    out32 = deep_and_wide_pallas(batch_size, index, feats, values, params,
                                 compute_dtype=jnp.float32)
    out32 = jax.block_until_ready(out32)
    assert out32.shape == (batch_size,)
    assert jnp.allclose(out32, ref, atol=1e-4, rtol=1e-4), (out32, ref)

    # f32 path with the exact scatter_add fallback for the wide part.
    out32s = deep_and_wide_pallas(batch_size, index, feats, values, params,
                                  compute_dtype=jnp.float32, onehot_index=False)
    out32s = jax.block_until_ready(out32s)
    assert jnp.allclose(out32s, ref, atol=1e-4, rtol=1e-4), (out32s, ref)

    # default bf16 path (halved table/weight bytes, bf16 MXU on v6e/v7x).
    outbf = deep_and_wide_pallas(batch_size, index, feats, values, params)
    outbf = jax.block_until_ready(outbf)
    assert jnp.allclose(outbf, ref, atol=5e-2, rtol=5e-2), (outbf, ref)

    print("KERNEL_OK")
</pallas_src>

<mosaic_0001>
module attributes {stable_mosaic.version = 11 : i64} {
  func.func @kernel(%arg0: i32, %arg1: memref<1x3xf32, #tpu.memory_space<vmem>>, %arg2: memref<6x32x10xf32, #tpu.memory_space<vmem>>, %arg3: memref<16x32xf32, #tpu.memory_space<vmem>>, %arg4: memref<16x1xf32, #tpu.memory_space<vmem>>, %arg5: memref<1x256xf32, #tpu.memory_space<vmem>>, %arg6: memref<6x256xi32, #tpu.memory_space<vmem>>, %arg7: memref<1x256xf32, #tpu.memory_space<vmem>>) attributes {dimension_semantics = [#tpu.dimension_semantics<parallel>], iteration_bounds = array<i64: 2>, scalar_prefetch = 0 : i64, scratch_operands = 0 : i64, tpu.core_type = #tpu.core_type<tc>, window_params = [{pipeline_mode = #tpu.pipeline_mode<synchronous>, transform_indices = @transform_0, window_bounds = array<i64: 1, 3>}, {pipeline_mode = #tpu.pipeline_mode<synchronous>, transform_indices = @transform_1, window_bounds = array<i64: 6, 32, 10>}, {pipeline_mode = #tpu.pipeline_mode<synchronous>, transform_indices = @transform_2, window_bounds = array<i64: 16, 32>}, {pipeline_mode = #tpu.pipeline_mode<synchronous>, transform_indices = @transform_3, window_bounds = array<i64: 16, 1>}, {transform_indices = @transform_4, window_bounds = array<i64: 1, 256>}, {transform_indices = @transform_5, window_bounds = array<i64: 6, 256>}, {transform_indices = @transform_6, window_bounds = array<i64: 1, 256>}]} {
    %0 = tpu.iota {dimensions = array<i32: 0>} : vector<10x256xi32>
    %c0 = arith.constant 0 : index
    %c0_0 = arith.constant 0 : index
    %1 = vector.load %arg6[%c0, %c0_0] : memref<6x256xi32, #tpu.memory_space<vmem>>, vector<1x256xi32>
    %2 = vector.broadcast %1 : vector<1x256xi32> to vector<10x256xi32>
    %3 = arith.cmpi eq, %0, %2 : vector<10x256xi32>
    %4 = arith.extui %3 : vector<10x256xi1> to vector<10x256xi32>
    %5 = arith.sitofp %4 : vector<10x256xi32> to vector<10x256xf32>
    %c0_1 = arith.constant 0 : index
    %c0_2 = arith.constant 0 : index
    %c0_3 = arith.constant 0 : index
    %6 = vector.load %arg2[%c0_1, %c0_2, %c0_3] : memref<6x32x10xf32, #tpu.memory_space<vmem>>, vector<1x32x10xf32>
    %7 = vector.shape_cast %6 : vector<1x32x10xf32> to vector<32x10xf32>
    %cst = arith.constant dense<0.000000e+00> : vector<32x256xf32>
    %8 = tpu.matmul %7, %5, %cst {dimension_numbers = #tpu.dot_dimension_numbers<[1], [0], [0], [1], [0, 0, 1, 1], [], []>} : vector<32x10xf32>, vector<10x256xf32>, vector<32x256xf32> -> vector<32x256xf32>
    %c1 = arith.constant 1 : index
    %c0_4 = arith.constant 0 : index
    %9 = vector.load %arg6[%c1, %c0_4] : memref<6x256xi32, #tpu.memory_space<vmem>>, vector<1x256xi32>
    %10 = vector.broadcast %9 : vector<1x256xi32> to vector<10x256xi32>
    %11 = arith.cmpi eq, %0, %10 : vector<10x256xi32>
    %12 = arith.extui %11 : vector<10x256xi1> to vector<10x256xi32>
    %13 = arith.sitofp %12 : vector<10x256xi32> to vector<10x256xf32>
    %c1_5 = arith.constant 1 : index
    %c0_6 = arith.constant 0 : index
    %c0_7 = arith.constant 0 : index
    %14 = vector.load %arg2[%c1_5, %c0_6, %c0_7] : memref<6x32x10xf32, #tpu.memory_space<vmem>>, vector<1x32x10xf32>
    %15 = vector.shape_cast %14 : vector<1x32x10xf32> to vector<32x10xf32>
    %cst_8 = arith.constant dense<0.000000e+00> : vector<32x256xf32>
    %16 = tpu.matmul %15, %13, %cst_8 {dimension_numbers = #tpu.dot_dimension_numbers<[1], [0], [0], [1], [0, 0, 1, 1], [], []>} : vector<32x10xf32>, vector<10x256xf32>, vector<32x256xf32> -> vector<32x256xf32>
    %17 = arith.addf %8, %16 : vector<32x256xf32>
    %c2 = arith.constant 2 : index
    %c0_9 = arith.constant 0 : index
    %18 = vector.load %arg6[%c2, %c0_9] : memref<6x256xi32, #tpu.memory_space<vmem>>, vector<1x256xi32>
    %19 = vector.broadcast %18 : vector<1x256xi32> to vector<10x256xi32>
    %20 = arith.cmpi eq, %0, %19 : vector<10x256xi32>
    %21 = arith.extui %20 : vector<10x256xi1> to vector<10x256xi32>
    %22 = arith.sitofp %21 : vector<10x256xi32> to vector<10x256xf32>
    %c2_10 = arith.constant 2 : index
    %c0_11 = arith.constant 0 : index
    %c0_12 = arith.constant 0 : index
    %23 = vector.load %arg2[%c2_10, %c0_11, %c0_12] : memref<6x32x10xf32, #tpu.memory_space<vmem>>, vector<1x32x10xf32>
    %24 = vector.shape_cast %23 : vector<1x32x10xf32> to vector<32x10xf32>
    %cst_13 = arith.constant dense<0.000000e+00> : vector<32x256xf32>
    %25 = tpu.matmul %24, %22, %cst_13 {dimension_numbers = #tpu.dot_dimension_numbers<[1], [0], [0], [1], [0, 0, 1, 1], [], []>} : vector<32x10xf32>, vector<10x256xf32>, vector<32x256xf32> -> vector<32x256xf32>
    %26 = arith.addf %17, %25 : vector<32x256xf32>
    %c3 = arith.constant 3 : index
    %c0_14 = arith.constant 0 : index
    %27 = vector.load %arg6[%c3, %c0_14] : memref<6x256xi32, #tpu.memory_space<vmem>>, vector<1x256xi32>
    %28 = vector.broadcast %27 : vector<1x256xi32> to vector<10x256xi32>
    %29 = arith.cmpi eq, %0, %28 : vector<10x256xi32>
    %30 = arith.extui %29 : vector<10x256xi1> to vector<10x256xi32>
    %31 = arith.sitofp %30 : vector<10x256xi32> to vector<10x256xf32>
    %c3_15 = arith.constant 3 : index
    %c0_16 = arith.constant 0 : index
    %c0_17 = arith.constant 0 : index
    %32 = vector.load %arg2[%c3_15, %c0_16, %c0_17] : memref<6x32x10xf32, #tpu.memory_space<vmem>>, vector<1x32x10xf32>
    %33 = vector.shape_cast %32 : vector<1x32x10xf32> to vector<32x10xf32>
    %cst_18 = arith.constant dense<0.000000e+00> : vector<32x256xf32>
    %34 = tpu.matmul %33, %31, %cst_18 {dimension_numbers = #tpu.dot_dimension_numbers<[1], [0], [0], [1], [0, 0, 1, 1], [], []>} : vector<32x10xf32>, vector<10x256xf32>, vector<32x256xf32> -> vector<32x256xf32>
    %35 = arith.addf %26, %34 : vector<32x256xf32>
    %c4 = arith.constant 4 : index
    %c0_19 = arith.constant 0 : index
    %36 = vector.load %arg6[%c4, %c0_19] : memref<6x256xi32, #tpu.memory_space<vmem>>, vector<1x256xi32>
    %37 = vector.broadcast %36 : vector<1x256xi32> to vector<10x256xi32>
    %38 = arith.cmpi eq, %0, %37 : vector<10x256xi32>
    %39 = arith.extui %38 : vector<10x256xi1> to vector<10x256xi32>
    %40 = arith.sitofp %39 : vector<10x256xi32> to vector<10x256xf32>
    %c4_20 = arith.constant 4 : index
    %c0_21 = arith.constant 0 : index
    %c0_22 = arith.constant 0 : index
    %41 = vector.load %arg2[%c4_20, %c0_21, %c0_22] : memref<6x32x10xf32, #tpu.memory_space<vmem>>, vector<1x32x10xf32>
    %42 = vector.shape_cast %41 : vector<1x32x10xf32> to vector<32x10xf32>
    %cst_23 = arith.constant dense<0.000000e+00> : vector<32x256xf32>
    %43 = tpu.matmul %42, %40, %cst_23 {dimension_numbers = #tpu.dot_dimension_numbers<[1], [0], [0], [1], [0, 0, 1, 1], [], []>} : vector<32x10xf32>, vector<10x256xf32>, vector<32x256xf32> -> vector<32x256xf32>
    %44 = arith.addf %35, %43 : vector<32x256xf32>
    %c5 = arith.constant 5 : index
    %c0_24 = arith.constant 0 : index
    %45 = vector.load %arg6[%c5, %c0_24] : memref<6x256xi32, #tpu.memory_space<vmem>>, vector<1x256xi32>
    %46 = vector.broadcast %45 : vector<1x256xi32> to vector<10x256xi32>
    %47 = arith.cmpi eq, %0, %46 : vector<10x256xi32>
    %48 = arith.extui %47 : vector<10x256xi1> to vector<10x256xi32>
    %49 = arith.sitofp %48 : vector<10x256xi32> to vector<10x256xf32>
    %c5_25 = arith.constant 5 : index
    %c0_26 = arith.constant 0 : index
    %c0_27 = arith.constant 0 : index
    %50 = vector.load %arg2[%c5_25, %c0_26, %c0_27] : memref<6x32x10xf32, #tpu.memory_space<vmem>>, vector<1x32x10xf32>
    %51 = vector.shape_cast %50 : vector<1x32x10xf32> to vector<32x10xf32>
    %cst_28 = arith.constant dense<0.000000e+00> : vector<32x256xf32>
    %52 = tpu.matmul %51, %49, %cst_28 {dimension_numbers = #tpu.dot_dimension_numbers<[1], [0], [0], [1], [0, 0, 1, 1], [], []>} : vector<32x10xf32>, vector<10x256xf32>, vector<32x256xf32> -> vector<32x256xf32>
    %53 = arith.addf %44, %52 : vector<32x256xf32>
    %c0_29 = arith.constant 0 : index
    %c0_30 = arith.constant 0 : index
    %54 = vector.load %arg1[%c0_29, %c0_30] : memref<1x3xf32, #tpu.memory_space<vmem>>, vector<1x1xf32>
    %55 = vector.broadcast %54 : vector<1x1xf32> to vector<32x256xf32>
    %56 = arith.addf %53, %55 : vector<32x256xf32>
    %cst_31 = arith.constant 0.000000e+00 : f32
    %57 = vector.broadcast %cst_31 : f32 to vector<32x256xf32>
    %58 = arith.maximumf %56, %57 : vector<32x256xf32>
    %c0_32 = arith.constant 0 : index
    %c0_33 = arith.constant 0 : index
    %59 = vector.load %arg3[%c0_32, %c0_33] : memref<16x32xf32, #tpu.memory_space<vmem>>, vector<16x32xf32>
    %cst_34 = arith.constant dense<0.000000e+00> : vector<16x256xf32>
    %60 = tpu.matmul %59, %58, %cst_34 {dimension_numbers = #tpu.dot_dimension_numbers<[1], [0], [0], [1], [0, 0, 1, 1], [], []>} : vector<16x32xf32>, vector<32x256xf32>, vector<16x256xf32> -> vector<16x256xf32>
    %c0_35 = arith.constant 0 : index
    %c1_36 = arith.constant 1 : index
    %61 = vector.load %arg1[%c0_35, %c1_36] : memref<1x3xf32, #tpu.memory_space<vmem>>, vector<1x1xf32>
    %62 = vector.broadcast %61 : vector<1x1xf32> to vector<16x256xf32>
    %63 = arith.addf %60, %62 : vector<16x256xf32>
    %cst_37 = arith.constant 0.000000e+00 : f32
    %64 = vector.broadcast %cst_37 : f32 to vector<16x256xf32>
    %65 = arith.maximumf %63, %64 : vector<16x256xf32>
    %c0_38 = arith.constant 0 : index
    %c0_39 = arith.constant 0 : index
    %66 = vector.load %arg4[%c0_38, %c0_39] : memref<16x1xf32, #tpu.memory_space<vmem>>, vector<16x1xf32>
    %67 = vector.broadcast %66 : vector<16x1xf32> to vector<16x256xf32>
    %68 = arith.mulf %67, %65 : vector<16x256xf32>
    %cst_40 = arith.constant dense<0.000000e+00> : vector<256xf32>
    %69 = vector.multi_reduction <add>, %68, %cst_40 [0] : vector<16x256xf32> to vector<256xf32>
    %70 = vector.shape_cast %69 : vector<256xf32> to vector<1x256xf32>
    %c0_41 = arith.constant 0 : index
    %c2_42 = arith.constant 2 : index
    %71 = vector.load %arg1[%c0_41, %c2_42] : memref<1x3xf32, #tpu.memory_space<vmem>>, vector<1x1xf32>
    %72 = vector.broadcast %71 : vector<1x1xf32> to vector<1x256xf32>
    %73 = arith.addf %70, %72 : vector<1x256xf32>
    %cst_43 = arith.constant 0.000000e+00 : f32
    %74 = vector.broadcast %cst_43 : f32 to vector<1x256xf32>
    %75 = arith.maximumf %73, %74 : vector<1x256xf32>
    %c0_44 = arith.constant 0 : index
    %c0_45 = arith.constant 0 : index
    %76 = vector.load %arg5[%c0_44, %c0_45] : memref<1x256xf32, #tpu.memory_space<vmem>>, vector<1x256xf32>
    %77 = arith.addf %76, %75 : vector<1x256xf32>
    %78 = arith.negf %77 : vector<1x256xf32>
    %79 = math.exp %78 : vector<1x256xf32>
    %cst_46 = arith.constant 1.000000e+00 : f32
    %80 = vector.broadcast %cst_46 : f32 to vector<1x256xf32>
    %81 = arith.addf %80, %79 : vector<1x256xf32>
    %82 = arith.divf %80, %81 : vector<1x256xf32>
    %c0_47 = arith.constant 0 : index
    %c0_48 = arith.constant 0 : index
    %83 = vector.load %arg7[%c0_47, %c0_48] : memref<1x256xf32, #tpu.memory_space<vmem>>, vector<1x256xf32>
    tpu.vector_store %arg7[%c0_47, %c0_48], %82 {strides = array<i32>} : memref<1x256xf32, #tpu.memory_space<vmem>>, vector<1x256xf32>,
    return
  }
  func.func @transform_0(%arg0: i32) -> (i32, i32) {
    %c0_i32 = arith.constant 0 : i32
    %c0_i32_0 = arith.constant 0 : i32
    %c0_i32_1 = arith.constant 0 : i32
    return %c0_i32, %c0_i32_0 : i32, i32
  }
  func.func @transform_1(%arg0: i32) -> (i32, i32, i32) {
    %c0_i32 = arith.constant 0 : i32
    %c0_i32_0 = arith.constant 0 : i32
    %c0_i32_1 = arith.constant 0 : i32
    %c0_i32_2 = arith.constant 0 : i32
    return %c0_i32, %c0_i32_0, %c0_i32_1 : i32, i32, i32
  }
  func.func @transform_2(%arg0: i32) -> (i32, i32) {
    %c0_i32 = arith.constant 0 : i32
    %c0_i32_0 = arith.constant 0 : i32
    %c0_i32_1 = arith.constant 0 : i32
    return %c0_i32, %c0_i32_0 : i32, i32
  }
  func.func @transform_3(%arg0: i32) -> (i32, i32) {
    %c0_i32 = arith.constant 0 : i32
    %c0_i32_0 = arith.constant 0 : i32
    %c0_i32_1 = arith.constant 0 : i32
    return %c0_i32, %c0_i32_0 : i32, i32
  }
  func.func @transform_4(%arg0: i32) -> (i32, i32) {
    %c0_i32 = arith.constant 0 : i32
    %c0_i32_0 = arith.constant 0 : i32
    return %c0_i32, %arg0 : i32, i32
  }
  func.func @transform_5(%arg0: i32) -> (i32, i32) {
    %c0_i32 = arith.constant 0 : i32
    %c0_i32_0 = arith.constant 0 : i32
    return %c0_i32, %arg0 : i32, i32
  }
  func.func @transform_6(%arg0: i32) -> (i32, i32) {
    %c0_i32 = arith.constant 0 : i32
    %c0_i32_0 = arith.constant 0 : i32
    return %c0_i32, %arg0 : i32, i32
  }
}

</mosaic_0001>

<llo_original>
// kernel: tpu_custom_call.1
$region0: #{tpu_custom_call.1}
  #allocation0 [shape = 'u32[]', space=smem, size = 0x4, offset = 0x4, fixed_abs, tag = 'smem constant byte address 0x4 - core index']
  #allocation1 [shape = 'u32[72,128]{1,0:T(1,128)}', space=vmem, size = 0x9000, scoped, tag = 'internal scratch']
  %s0 = inlined_call_operand.vmem [shape: f32[1,3], index: 0, kind: input, shape index: {}]
  %s1 = inlined_call_operand.vmem [shape: f32[6,32,10], index: 1, kind: input, shape index: {}]
  %s2 = inlined_call_operand.vmem [shape: f32[16,32], index: 2, kind: input, shape index: {}]
  %s3 = inlined_call_operand.vmem [shape: f32[16,1], index: 3, kind: input, shape index: {}]
  %s4 = inlined_call_operand.vmem [shape: f32[1,512], index: 4, kind: input, shape index: {}]
  %s5 = inlined_call_operand.vmem [shape: s32[6,512], index: 5, kind: input, shape index: {}]
  %s6 = inlined_call_operand.hbm [shape: f32[1,512], index: 6, kind: output, shape index: {}]
  %s7 = sld [smem:[#allocation0]]
  $region57: #{tpu_custom_call.1} parent=0
    _
  %s9 = ssub.s32 1, %s7
  %s10 = scalar_select 0, %s9, %s7
  $region1: #{tpu_custom_call.1} parent=0
    #allocation2 [shape = 'u8[2048]{0}', space=vmem, size = 0x800, scoped, tag = 'output window, operand 0']
    #allocation3 [shape = 's32[2]{0}', space=sflag, size = 0x8, scoped, tag = 'scoped memory for tpu_custom_call.1']
    %11 = vsyncpa [#allocation3], 0
    %s12 = scalar_lea.sflag [#allocation3], 1
    %13 = vsyncpa %s12, 0
    loop: start=0, step=1, limit=4
    $region2: #{tpu_custom_call.1} parent=1 // loop_pre_header
      _
    $region3: #{tpu_custom_call.1} parent=1 // loop_header
      %s15 = sphi 0, %s19
      %p16 = scmp.ge.s32.totalorder %s15, 4
      %s23 = sphi 0, %s23
      %s25 = sphi 0, %s23
      %s26 = sphi 0, %s25
      %s40 = sphi 0, %s26
      %s44 = sphi 0, %s44
      %s46 = sphi 0, %s44
      %s47 = sphi 0, %s46
      %s61 = sphi 0, %s47
      %s65 = sphi 0, %s65
      %s67 = sphi 0, %s65
      %s68 = sphi 0, %s67
      %s82 = sphi 0, %s68
      %s86 = sphi 0, %s86
      %s88 = sphi 0, %s86
      %s89 = sphi 0, %s88
      %s103 = sphi 0, %s89
      %s109 = sphi 0, %s111
      %s112 = sphi 0, %s109
      %s113 = sphi 0, %s112
      %s129 = sphi 0, %s113
      %s135 = sphi 0, %s137
      %s138 = sphi 0, %s135
      %s139 = sphi 0, %s138
      %s155 = sphi 0, %s139
      %s161 = sphi 0, %s163
      %s164 = sphi 0, %s161
      %s165 = sphi 0, %s164
      %s181 = sphi 0, %s165
    $region4: #{tpu_custom_call.1} parent=1 // loop_header_branch
      %18 = sbr.rel (%p16) target = $region8
    $region5: #{tpu_custom_call.1} parent=1 // loop_body
      %s20 = ssub.s32 %s15, 1
      %s21 = ssub.s32 %s15, 2
      %s22 = sadd.s32 %s15, 1
      %s24 = sadd.s32 %s23, 1
      %p27 = scmp.eq.s32.totalorder %s15, 1
      %p28 = scmp.ne.s32.totalorder %s23, %s25
      %p29 = scmp.eq.s32.totalorder %s15, 0
      %p30 = por %p28, %p29
      %p31 = scmp.ne.s32.totalorder %s23, %s25
      %p32 = scmp.eq.s32.totalorder %s20, 1
      %p33 = por %p31, %p32
      %p34 = scmp.ne.s32.totalorder %s25, %s26
      %p35 = scmp.eq.s32.totalorder %s20, 0
      %p36 = por %p34, %p35
      %p37 = scmp.ne.s32.totalorder %s25, %s26
      %p38 = scmp.eq.s32.totalorder %s21, 1
      %p39 = por %p37, %p38
      %p41 = scmp.ne.s32.totalorder %s26, %s40
      %p42 = scmp.eq.s32.totalorder %s21, 0
      %p43 = por %p41, %p42
      %s45 = sadd.s32 %s44, 1
      %p48 = scmp.eq.s32.totalorder %s15, 1
      %p49 = scmp.ne.s32.totalorder %s44, %s46
      %p50 = scmp.eq.s32.totalorder %s15, 0
      %p51 = por %p49, %p50
      %p52 = scmp.ne.s32.totalorder %s44, %s46
      %p53 = scmp.eq.s32.totalorder %s20, 1
      %p54 = por %p52, %p53
      %p55 = scmp.ne.s32.totalorder %s46, %s47
      %p56 = scmp.eq.s32.totalorder %s20, 0
      %p57 = por %p55, %p56
      %p58 = scmp.ne.s32.totalorder %s46, %s47
      %p59 = scmp.eq.s32.totalorder %s21, 1
      %p60 = por %p58, %p59
      %p62 = scmp.ne.s32.totalorder %s47, %s61
      %p63 = scmp.eq.s32.totalorder %s21, 0
      %p64 = por %p62, %p63
      %s66 = sadd.s32 %s65, 1
      %p69 = scmp.eq.s32.totalorder %s15, 1
      %p70 = scmp.ne.s32.totalorder %s65, %s67
      %p71 = scmp.eq.s32.totalorder %s15, 0
      %p72 = por %p70, %p71
      %p73 = scmp.ne.s32.totalorder %s65, %s67
      %p74 = scmp.eq.s32.totalorder %s20, 1
      %p75 = por %p73, %p74
      %p76 = scmp.ne.s32.totalorder %s67, %s68
      %p77 = scmp.eq.s32.totalorder %s20, 0
      %p78 = por %p76, %p77
      %p79 = scmp.ne.s32.totalorder %s67, %s68
      %p80 = scmp.eq.s32.totalorder %s21, 1
      %p81 = por %p79, %p80
      %p83 = scmp.ne.s32.totalorder %s68, %s82
      %p84 = scmp.eq.s32.totalorder %s21, 0
      %p85 = por %p83, %p84
      %s87 = sadd.s32 %s86, 1
      %p90 = scmp.eq.s32.totalorder %s15, 1
      %p91 = scmp.ne.s32.totalorder %s86, %s88
      %p92 = scmp.eq.s32.totalorder %s15, 0
      %p93 = por %p91, %p92
      %p94 = scmp.ne.s32.totalorder %s86, %s88
      %p95 = scmp.eq.s32.totalorder %s20, 1
      %p96 = por %p94, %p95
      %p97 = scmp.ne.s32.totalorder %s88, %s89
      %p98 = scmp.eq.s32.totalorder %s20, 0
      %p99 = por %p97, %p98
      %p100 = scmp.ne.s32.totalorder %s88, %s89
      %p101 = scmp.eq.s32.totalorder %s21, 1
      %p102 = por %p100, %p101
      %p104 = scmp.ne.s32.totalorder %s89, %s103
      %p105 = scmp.eq.s32.totalorder %s21, 0
      %p106 = por %p104, %p105
      %s107 = ssub.s32 %s15, %s22
      %p108 = scmp.eq.s32.totalorder %s107, 0
      %s110 = sadd.s32 %s109, 1
      %s111 = scalar_select %p108, %s109, %s110
      %p114 = pneg %p108
      %p115 = scmp.eq.s32.totalorder %s15, 1
      %p116 = por %p114, %p115
      %p117 = scmp.ne.s32.totalorder %s109, %s112
      %p118 = scmp.eq.s32.totalorder %s15, 0
      %p119 = por %p117, %p118
      %p120 = scmp.ne.s32.totalorder %s109, %s112
      %p121 = scmp.eq.s32.totalorder %s20, 1
      %p122 = por %p120, %p121
      %p123 = scmp.ne.s32.totalorder %s112, %s113
      %p124 = scmp.eq.s32.totalorder %s20, 0
      %p125 = por %p123, %p124
      %p126 = scmp.ne.s32.totalorder %s112, %s113
      %p127 = scmp.eq.s32.totalorder %s21, 1
      %p128 = por %p126, %p127
      %p130 = scmp.ne.s32.totalorder %s113, %s129
      %p131 = scmp.eq.s32.totalorder %s21, 0
      %p132 = por %p130, %p131
      %s133 = ssub.s32 %s15, %s22
      %p134 = scmp.eq.s32.totalorder %s133, 0
      %s136 = sadd.s32 %s135, 1
      %s137 = scalar_select %p134, %s135, %s136
      %p140 = pneg %p134
      %p141 = scmp.eq.s32.totalorder %s15, 1
      %p142 = por %p140, %p141
      %p143 = scmp.ne.s32.totalorder %s135, %s138
      %p144 = scmp.eq.s32.totalorder %s15, 0
      %p145 = por %p143, %p144
      %p146 = scmp.ne.s32.totalorder %s135, %s138
      %p147 = scmp.eq.s32.totalorder %s20, 1
      %p148 = por %p146, %p147
      %p149 = scmp.ne.s32.totalorder %s138, %s139
      %p150 = scmp.eq.s32.totalorder %s20, 0
      %p151 = por %p149, %p150
      %p152 = scmp.ne.s32.totalorder %s138, %s139
      %p153 = scmp.eq.s32.totalorder %s21, 1
      %p154 = por %p152, %p153
      %p156 = scmp.ne.s32.totalorder %s139, %s155
      %p157 = scmp.eq.s32.totalorder %s21, 0
      %p158 = por %p156, %p157
      %s159 = ssub.s32 %s15, %s22
      %p160 = scmp.eq.s32.totalorder %s159, 0
      %s162 = sadd.s32 %s161, 1
      %s163 = scalar_select %p160, %s161, %s162
      %p166 = pneg %p160
      %p167 = scmp.eq.s32.totalorder %s15, 1
      %p168 = por %p166, %p167
      %p169 = scmp.ne.s32.totalorder %s161, %s164
      %p170 = scmp.eq.s32.totalorder %s15, 0
      %p171 = por %p169, %p170
      %p172 = scmp.ne.s32.totalorder %s161, %s164
      %p173 = scmp.eq.s32.totalorder %s20, 1
      %p174 = por %p172, %p173
      %p175 = scmp.ne.s32.totalorder %s164, %s165
      %p176 = scmp.eq.s32.totalorder %s20, 0
      %p177 = por %p175, %p176
      %p178 = scmp.ne.s32.totalorder %s164, %s165
      %p179 = scmp.eq.s32.totalorder %s21, 1
      %p180 = por %p178, %p179
      %p182 = scmp.ne.s32.totalorder %s165, %s181
      %p183 = scmp.eq.s32.totalorder %s21, 0
      %p184 = por %p182, %p183
      %p185 = scmp.le.s32.totalorder 1, %s15
      %p186 = scmp.lt.s32.totalorder %s15, 3
      %p187 = pnand %p185, %p186
      %p188 = pneg %p187
      // Predicated region
      $region9: #{tpu_custom_call.1} parent=5 // pred_check
        _
      $region10: #{tpu_custom_call.1} parent=5 // pred_check_branch
        %190 = sbr.rel (%p187) target = $region12
      $region11: #{tpu_custom_call.1} parent=5 // pred_region
        %s191 = ssub.s32 %s15, 1
        // Predicated region
        $region13: #{tpu_custom_call.1} parent=11 // pred_check
          %p192 = pneg %p36
        $region14: #{tpu_custom_call.1} parent=11 // pred_check_branch
          %194 = sbr.rel (%p192) target = $region16
        $region15: #{tpu_custom_call.1} parent=11 // pred_region
          _
        $region16: #{tpu_custom_call.1} parent=11 // pred_fallthru
          _
        // Predicated region
        $region17: #{tpu_custom_call.1} parent=11 // pred_check
          %p195 = pneg %p57
        $region18: #{tpu_custom_call.1} parent=11 // pred_check_branch
          %197 = sbr.rel (%p195) target = $region20
        $region19: #{tpu_custom_call.1} parent=11 // pred_region
          _
        $region20: #{tpu_custom_call.1} parent=11 // pred_fallthru
          _
        // Predicated region
        $region21: #{tpu_custom_call.1} parent=11 // pred_check
          %p198 = pneg %p78
        $region22: #{tpu_custom_call.1} parent=11 // pred_check_branch
          %200 = sbr.rel (%p198) target = $region24
        $region23: #{tpu_custom_call.1} parent=11 // pred_region
          _
        $region24: #{tpu_custom_call.1} parent=11 // pred_fallthru
          _
        // Predicated region
        $region25: #{tpu_custom_call.1} parent=11 // pred_check
          %p201 = pneg %p99
        $region26: #{tpu_custom_call.1} parent=11 // pred_check_branch
          %203 = sbr.rel (%p201) target = $region28
        $region27: #{tpu_custom_call.1} parent=11 // pred_region
          _
        $region28: #{tpu_custom_call.1} parent=11 // pred_fallthru
          _
      $region12: #{tpu_custom_call.1} parent=5 // pred_fallthru
        _
      %p204 = scmp.lt.s32.totalorder %s15, 2
      // Predicated region
      $region29: #{tpu_custom_call.1} parent=5 // pred_check
        %p205 = pneg %p204
      $region30: #{tpu_custom_call.1} parent=5 // pred_check_branch
        %207 = sbr.rel (%p205) target = $region32
      $region31: #{tpu_custom_call.1} parent=5 // pred_region
        // Predicated region
        $region33: #{tpu_custom_call.1} parent=31 // pred_check
          %p208 = pneg %p119
        $region34: #{tpu_custom_call.1} parent=31 // pred_check_branch
          %210 = sbr.rel (%p208) target = $region36
        $region35: #{tpu_custom_call.1} parent=31 // pred_region
          %s211 = smul.u32 2, %s15
          %p212 = scmp.lt.s32.totalorder %s211, 3
          %s213 = scalar_select %p212, %s211, 3
          %s214 = scalar_lea.vmem %s4, %s213
          %s215 = smul.u32 2, %s15
        $region36: #{tpu_custom_call.1} parent=31 // pred_fallthru
          _
        // Predicated region
        $region37: #{tpu_custom_call.1} parent=31 // pred_check
          %p216 = pneg %p145
        $region38: #{tpu_custom_call.1} parent=31 // pred_check_branch
          %218 = sbr.rel (%p216) target = $region40
        $region39: #{tpu_custom_call.1} parent=31 // pred_region
          %s219 = smul.u32 2, %s15
          %p220 = scmp.lt.s32.totalorder %s219, 3
          %s221 = scalar_select %p220, %s219, 3
          %s222 = smul.addr %s221, 8
          %s223 = scalar_lea.vmem %s5, %s222
          %s224 = smul.u32 2, %s15
        $region40: #{tpu_custom_call.1} parent=31 // pred_fallthru
          _
      $region32: #{tpu_custom_call.1} parent=5 // pred_fallthru
        _
      %p225 = scmp.le.s32.totalorder 1, %s15
      %p226 = scmp.lt.s32.totalorder %s15, 3
      %p227 = pnand %p225, %p226
      %p228 = pneg %p227
      // Predicated region
      $region41: #{tpu_custom_call.1} parent=5 // pred_check
        _
      $region42: #{tpu_custom_call.1} parent=5 // pred_check_branch
        %230 = sbr.rel (%p227) target = $region44
      $region43: #{tpu_custom_call.1} parent=5 // pred_region
        %s231 = ssub.s32 %s15, 1
        %p232 = pneg %p36
        %p233 = pneg %p33
        %p234 = pneg %p57
        %p235 = pneg %p54
        %p236 = pneg %p78
        %p237 = pneg %p75
        %p238 = pneg %p99
        %p239 = pneg %p96
        %s240 = smul.u32 2, %s20
        %p241 = scmp.lt.s32.totalorder %s240, 3
        %s242 = scalar_select %p241, %s240, 3
        %s243 = scalar_lea.vmem %s4, %s242
        %p244 = pneg %p125
        %p245 = pneg %p122
        %s246 = smul.u32 2, %s20
        %p247 = scmp.lt.s32.totalorder %s246, 3
        %s248 = scalar_select %p247, %s246, 3
        %s249 = smul.addr %s248, 8
        %s250 = scalar_lea.vmem %s5, %s249
        %p251 = pneg %p151
        %p252 = pneg %p148
        %p253 = pneg %p177
        %p254 = pneg %p174
        %s255 = sand.u32 %s164, 1
        %s256 = scalar_lea.sflag [#allocation3], %s255
        %s257 = sand.u32 %s164, 1
        %s258 = smul.addr %s257, 2
        %s259 = scalar_lea.vmem [#allocation2], %s258
        %s260 = smul.u32 2, %s20
        %p261 = scmp.lt.s32.totalorder %s260, 3
        %s262 = scalar_select %p261, %s260, 3
        %s263 = scalar_lea.vmem %s4, %s262
        %s264 = smul.u32 2, %s20
        %s265 = smul.u32 2, %s20
        %p266 = scmp.lt.s32.totalorder %s265, 3
        %s267 = scalar_select %p266, %s265, 3
        %s268 = smul.addr %s267, 8
        %s269 = scalar_lea.vmem %s5, %s268
        %s270 = smul.u32 2, %s20
        %s271 = smul.u32 2, %s20
        %v272 = vlaneseq
        %v273 = vshrl.u32 %v272, 7
        %v274 = vadd.s32 %v273, 8
        %v275 = vld [vmem:[%s269] ss:$8 sm:$0x3]
        %v276 = vperm.slane %v275, 0
        %v277 = vperm.slane %v275, 1
        %vm278 = vcmp.eq.s32.totalorder %v273, %v276
        %vm279 = vcmp.eq.s32.totalorder %v273, %v277
        %vm280 = vcmp.eq.s32.totalorder %v274, %v276
        %vm281 = vcmp.eq.s32.totalorder %v274, %v277
        %v282 = vsel %vm278, 1, 0
        %v283 = vsel %vm279, 1, 0
        %v284 = vsel %vm280, 1, 0
        %v285 = vsel %vm281, 1, 0
        %v286 = vcvt.s32.f32 %v282
        %v287 = vcvt.s32.f32 %v283
        %v288 = vcvt.s32.f32 %v284
        %v289 = vcvt.s32.f32 %v285
        %v290 = vld [vmem:[%s1] sm:$0xff]
        %v291 = vld [vmem:[%s1 + $0x8] sm:$0xff]
        %v292 = vld [vmem:[%s1 + $0x10] sm:$0xff]
        %v293 = vld [vmem:[%s1 + $0x18] sm:$0xff]
        %s294 = scalar_lea.vmem %s269, 1
        %v295 = vld [vmem:[%s294] ss:$8 sm:$0x3]
        %v296 = vperm.slane %v295, 0
        %v297 = vperm.slane %v295, 1
        %vm298 = vcmp.eq.s32.totalorder %v273, %v296
        %vm299 = vcmp.eq.s32.totalorder %v273, %v297
        %vm300 = vcmp.eq.s32.totalorder %v274, %v296
        %vm301 = vcmp.eq.s32.totalorder %v274, %v297
        %v302 = vsel %vm298, 1, 0
        %v303 = vsel %vm299, 1, 0
        %v304 = vsel %vm300, 1, 0
        %v305 = vsel %vm301, 1, 0
        %v306 = vcvt.s32.f32 %v302
        %v307 = vcvt.s32.f32 %v303
        %v308 = vcvt.s32.f32 %v304
        %v309 = vcvt.s32.f32 %v305
        %s310 = scalar_lea.vmem %s1, 32
        %v311 = vld [vmem:[%s310] sm:$0xff]
        %v312 = vld [vmem:[%s310 + $0x8] sm:$0xff]
        %v313 = vld [vmem:[%s310 + $0x10] sm:$0xff]
        %v314 = vld [vmem:[%s310 + $0x18] sm:$0xff]
        %vm315 = vcmask 80896
        %v317 = vsel %vm315, %v311, 0
        %v320 = vsel %vm315, %v312, 0
        %v323 = vsel %vm315, %v313, 0
        %v326 = vsel %vm315, %v314, 0
        %vm328 = vcmask 1041408
        %v330 = vsel %vm328, %v308, 0
        %v333 = vsel %vm328, %v309, 0
        %335 = vmatpush.msra.mxu0 0.0
        %336 = vmatpush.msra.mxu0 0.0
        %337 = vmatpush.msra.mxu0 0.0
        %338 = vmatpush.msra.mxu0 0.0
        %339 = vmatpush.msra.mxu0 0.0
        %340 = vmatpush.msra.mxu0 0.0
        %341 = vmatpush.msra.mxu0 0.0
        %342 = vmatpush.msra.mxu0 0.0
        %343 = vmatpush.msra.mxu0 0.0
        %344 = vmatpush.msra.mxu0 0.0
        %345 = vmatpush.msra.mxu0 0.0
        %346 = vmatpush.msra.mxu0 0.0
        %347 = vmatpush.msra.mxu0 0.0
        %348 = vmatpush.msra.mxu0 0.0
        %349 = vmatpush.msra.mxu0 %v330
        %350 = vmatpush.msra.mxu0 %v306
        %351 = vmatmul.f32.gmra.mxu0 %v317
        %v352 = vpop.f32.mrf.mxu0
        %v353 = vadd.f32 0.0, %v352
        %354 = vmatmul.f32.gmra.mxu0 %v320
        %v355 = vpop.f32.mrf.mxu0
        %v356 = vadd.f32 0.0, %v355
        %357 = vmatmul.f32.gmra.mxu0 %v323
        %v358 = vpop.f32.mrf.mxu0
        %v359 = vadd.f32 0.0, %v358
        %360 = vmatmul.f32.gmra.mxu0 %v326
        %v361 = vpop.f32.mrf.mxu0
        %v362 = vadd.f32 0.0, %v361
        %363 = vdwg.mxu0
        %364 = vmatpush.msra.mxu0 0.0
        %365 = vmatpush.msra.mxu0 0.0
        %366 = vmatpush.msra.mxu0 0.0
        %367 = vmatpush.msra.mxu0 0.0
        %368 = vmatpush.msra.mxu0 0.0
        %369 = vmatpush.msra.mxu0 0.0
        %370 = vmatpush.msra.mxu0 0.0
        %371 = vmatpush.msra.mxu0 0.0
        %372 = vmatpush.msra.mxu0 0.0
        %373 = vmatpush.msra.mxu0 0.0
        %374 = vmatpush.msra.mxu0 0.0
        %375 = vmatpush.msra.mxu0 0.0
        %376 = vmatpush.msra.mxu0 0.0
        %377 = vmatpush.msra.mxu0 0.0
        %378 = vmatpush.msra.mxu0 %v333
        %379 = vmatpush.msra.mxu0 %v307
        %380 = vmatmul.f32.gmra.mxu0 %v317
        %v381 = vpop.f32.mrf.mxu0
        %v382 = vadd.f32 0.0, %v381
        %383 = vmatmul.f32.gmra.mxu0 %v320
        %v384 = vpop.f32.mrf.mxu0
        %v385 = vadd.f32 0.0, %v384
        %386 = vmatmul.f32.gmra.mxu0 %v323
        %v387 = vpop.f32.mrf.mxu0
        %v388 = vadd.f32 0.0, %v387
        %389 = vmatmul.f32.gmra.mxu0 %v326
        %v390 = vpop.f32.mrf.mxu0
        %v391 = vadd.f32 0.0, %v390
        %392 = vdwg.mxu0
        %v394 = vsel %vm315, %v290, 0
        %v397 = vsel %vm315, %v291, 0
        %v400 = vsel %vm315, %v292, 0
        %v403 = vsel %vm315, %v293, 0
        %v406 = vsel %vm328, %v288, 0
        %v409 = vsel %vm328, %v289, 0
        %411 = vmatpush.msra.mxu0 0.0
        %412 = vmatpush.msra.mxu0 0.0
        %413 = vmatpush.msra.mxu0 0.0
        %414 = vmatpush.msra.mxu0 0.0
        %415 = vmatpush.msra.mxu0 0.0
        %416 = vmatpush.msra.mxu0 0.0
        %417 = vmatpush.msra.mxu0 0.0
        %418 = vmatpush.msra.mxu0 0.0
        %419 = vmatpush.msra.mxu0 0.0
        %420 = vmatpush.msra.mxu0 0.0
        %421 = vmatpush.msra.mxu0 0.0
        %422 = vmatpush.msra.mxu0 0.0
        %423 = vmatpush.msra.mxu0 0.0
        %424 = vmatpush.msra.mxu0 0.0
        %425 = vmatpush.msra.mxu0 %v406
        %426 = vmatpush.msra.mxu0 %v286
        %427 = vmatmul.f32.gmra.mxu0 %v394
        %v428 = vpop.f32.mrf.mxu0
        %v429 = vadd.f32 %v353, %v428
        %430 = vmatmul.f32.gmra.mxu0 %v397
        %v431 = vpop.f32.mrf.mxu0
        %v432 = vadd.f32 %v356, %v431
        %433 = vmatmul.f32.gmra.mxu0 %v400
        %v434 = vpop.f32.mrf.mxu0
        %v435 = vadd.f32 %v359, %v434
        %436 = vmatmul.f32.gmra.mxu0 %v403
        %v437 = vpop.f32.mrf.mxu0
        %v438 = vadd.f32 %v362, %v437
        %439 = vdwg.mxu0
        %440 = vmatpush.msra.mxu0 0.0
        %441 = vmatpush.msra.mxu0 0.0
        %442 = vmatpush.msra.mxu0 0.0
        %443 = vmatpush.msra.mxu0 0.0
        %444 = vmatpush.msra.mxu0 0.0
        %445 = vmatpush.msra.mxu0 0.0
        %446 = vmatpush.msra.mxu0 0.0
        %447 = vmatpush.msra.mxu0 0.0
        %448 = vmatpush.msra.mxu0 0.0
        %449 = vmatpush.msra.mxu0 0.0
        %450 = vmatpush.msra.mxu0 0.0
        %451 = vmatpush.msra.mxu0 0.0
        %452 = vmatpush.msra.mxu0 0.0
        %453 = vmatpush.msra.mxu0 0.0
        %454 = vmatpush.msra.mxu0 %v409
        %455 = vmatpush.msra.mxu0 %v287
        %456 = vmatmul.f32.gmra.mxu0 %v394
        %v457 = vpop.f32.mrf.mxu0
        %v458 = vadd.f32 %v382, %v457
        %459 = vmatmul.f32.gmra.mxu0 %v397
        %v460 = vpop.f32.mrf.mxu0
        %v461 = vadd.f32 %v385, %v460
        %462 = vmatmul.f32.gmra.mxu0 %v400
        %v463 = vpop.f32.mrf.mxu0
        %v464 = vadd.f32 %v388, %v463
        %465 = vmatmul.f32.gmra.mxu0 %v403
        %v466 = vpop.f32.mrf.mxu0
        %v467 = vadd.f32 %v391, %v466
        %468 = vdwg.mxu0
        %s469 = scalar_lea.vmem %s269, 2
        %v470 = vld [vmem:[%s469] ss:$8 sm:$0x3]
        %v471 = vperm.slane %v470, 0
        %v472 = vperm.slane %v470, 1
        %vm473 = vcmp.eq.s32.totalorder %v273, %v471
        %vm474 = vcmp.eq.s32.totalorder %v273, %v472
        %vm475 = vcmp.eq.s32.totalorder %v274, %v471
        %vm476 = vcmp.eq.s32.totalorder %v274, %v472
        %v477 = vsel %vm473, 1, 0
        %v478 = vsel %vm474, 1, 0
        %v479 = vsel %vm475, 1, 0
        %v480 = vsel %vm476, 1, 0
        %v481 = vcvt.s32.f32 %v477
        %v482 = vcvt.s32.f32 %v478
        %v483 = vcvt.s32.f32 %v479
        %v484 = vcvt.s32.f32 %v480
        %s485 = scalar_lea.vmem %s1, 64
        %v486 = vld [vmem:[%s485] sm:$0xff]
        %v487 = vld [vmem:[%s485 + $0x8] sm:$0xff]
        %v488 = vld [vmem:[%s485 + $0x10] sm:$0xff]
        %v489 = vld [vmem:[%s485 + $0x18] sm:$0xff]
        %v491 = vsel %vm315, %v486, 0
        %v494 = vsel %vm315, %v487, 0
        %v497 = vsel %vm315, %v488, 0
        %v500 = vsel %vm315, %v489, 0
        %v503 = vsel %vm328, %v483, 0
        %v506 = vsel %vm328, %v484, 0
        %508 = vmatpush.msra.mxu0 0.0
        %509 = vmatpush.msra.mxu0 0.0
        %510 = vmatpush.msra.mxu0 0.0
        %511 = vmatpush.msra.mxu0 0.0
        %512 = vmatpush.msra.mxu0 0.0
        %513 = vmatpush.msra.mxu0 0.0
        %514 = vmatpush.msra.mxu0 0.0
        %515 = vmatpush.msra.mxu0 0.0
        %516 = vmatpush.msra.mxu0 0.0
        %517 = vmatpush.msra.mxu0 0.0
        %518 = vmatpush.msra.mxu0 0.0
        %519 = vmatpush.msra.mxu0 0.0
        %520 = vmatpush.msra.mxu0 0.0
        %521 = vmatpush.msra.mxu0 0.0
        %522 = vmatpush.msra.mxu0 %v503
        %523 = vmatpush.msra.mxu0 %v481
        %524 = vmatmul.f32.gmra.mxu0 %v491
        %v525 = vpop.f32.mrf.mxu0
        %v526 = vadd.f32 0.0, %v525
        %527 = vmatmul.f32.gmra.mxu0 %v494
        %v528 = vpop.f32.mrf.mxu0
        %v529 = vadd.f32 0.0, %v528
        %530 = vmatmul.f32.gmra.mxu0 %v497
        %v531 = vpop.f32.mrf.mxu0
        %v532 = vadd.f32 0.0, %v531
        %533 = vmatmul.f32.gmra.mxu0 %v500
        %v534 = vpop.f32.mrf.mxu0
        %v535 = vadd.f32 0.0, %v534
        %536 = vdwg.mxu0
        %537 = vmatpush.msra.mxu0 0.0
        %538 = vmatpush.msra.mxu0 0.0
        %539 = vmatpush.msra.mxu0 0.0
        %540 = vmatpush.msra.mxu0 0.0
        %541 = vmatpush.msra.mxu0 0.0
        %542 = vmatpush.msra.mxu0 0.0
        %543 = vmatpush.msra.mxu0 0.0
        %544 = vmatpush.msra.mxu0 0.0
        %545 = vmatpush.msra.mxu0 0.0
        %546 = vmatpush.msra.mxu0 0.0
        %547 = vmatpush.msra.mxu0 0.0
        %548 = vmatpush.msra.mxu0 0.0
        %549 = vmatpush.msra.mxu0 0.0
        %550 = vmatpush.msra.mxu0 0.0
        %551 = vmatpush.msra.mxu0 %v506
        %552 = vmatpush.msra.mxu0 %v482
        %553 = vmatmul.f32.gmra.mxu0 %v491
        %v554 = vpop.f32.mrf.mxu0
        %v555 = vadd.f32 0.0, %v554
        %556 = vmatmul.f32.gmra.mxu0 %v494
        %v557 = vpop.f32.mrf.mxu0
        %v558 = vadd.f32 0.0, %v557
        %559 = vmatmul.f32.gmra.mxu0 %v497
        %v560 = vpop.f32.mrf.mxu0
        %v561 = vadd.f32 0.0, %v560
        %562 = vmatmul.f32.gmra.mxu0 %v500
        %v563 = vpop.f32.mrf.mxu0
        %v564 = vadd.f32 0.0, %v563
        %565 = vdwg.mxu0
        %v566 = vadd.f32 %v429, %v526
        %v567 = vadd.f32 %v458, %v555
        %v568 = vadd.f32 %v432, %v529
        %v569 = vadd.f32 %v461, %v558
        %v570 = vadd.f32 %v435, %v532
        %v571 = vadd.f32 %v464, %v561
        %v572 = vadd.f32 %v438, %v535
        %v573 = vadd.f32 %v467, %v564
        %s574 = scalar_lea.vmem %s269, 3
        %v575 = vld [vmem:[%s574] ss:$8 sm:$0x3]
        %v576 = vperm.slane %v575, 0
        %v577 = vperm.slane %v575, 1
        %vm578 = vcmp.eq.s32.totalorder %v273, %v576
        %vm579 = vcmp.eq.s32.totalorder %v273, %v577
        %vm580 = vcmp.eq.s32.totalorder %v274, %v576
        %vm581 = vcmp.eq.s32.totalorder %v274, %v577
        %v582 = vsel %vm578, 1, 0
        %v583 = vsel %vm579, 1, 0
        %v584 = vsel %vm580, 1, 0
        %v585 = vsel %vm581, 1, 0
        %v586 = vcvt.s32.f32 %v582
        %v587 = vcvt.s32.f32 %v583
        %v588 = vcvt.s32.f32 %v584
        %v589 = vcvt.s32.f32 %v585
        %s590 = scalar_lea.vmem %s1, 96
        %v591 = vld [vmem:[%s590] sm:$0xff]
        %v592 = vld [vmem:[%s590 + $0x8] sm:$0xff]
        %v593 = vld [vmem:[%s590 + $0x10] sm:$0xff]
        %v594 = vld [vmem:[%s590 + $0x18] sm:$0xff]
        %v596 = vsel %vm315, %v591, 0
        %v599 = vsel %vm315, %v592, 0
        %v602 = vsel %vm315, %v593, 0
        %v605 = vsel %vm315, %v594, 0
        %v608 = vsel %vm328, %v588, 0
        %v611 = vsel %vm328, %v589, 0
        %613 = vmatpush.msra.mxu0 0.0
        %614 = vmatpush.msra.mxu0 0.0
        %615 = vmatpush.msra.mxu0 0.0
        %616 = vmatpush.msra.mxu0 0.0
        %617 = vmatpush.msra.mxu0 0.0
        %618 = vmatpush.msra.mxu0 0.0
        %619 = vmatpush.msra.mxu0 0.0
        %620 = vmatpush.msra.mxu0 0.0
        %621 = vmatpush.msra.mxu0 0.0
        %622 = vmatpush.msra.mxu0 0.0
        %623 = vmatpush.msra.mxu0 0.0
        %624 = vmatpush.msra.mxu0 0.0
        %625 = vmatpush.msra.mxu0 0.0
        %626 = vmatpush.msra.mxu0 0.0
        %627 = vmatpush.msra.mxu0 %v608
        %628 = vmatpush.msra.mxu0 %v586
        %629 = vmatmul.f32.gmra.mxu0 %v596
        %v630 = vpop.f32.mrf.mxu0
        %v631 = vadd.f32 0.0, %v630
        %632 = vmatmul.f32.gmra.mxu0 %v599
        %v633 = vpop.f32.mrf.mxu0
        %v634 = vadd.f32 0.0, %v633
        %635 = vmatmul.f32.gmra.mxu0 %v602
        %v636 = vpop.f32.mrf.mxu0
        %v637 = vadd.f32 0.0, %v636
        %638 = vmatmul.f32.gmra.mxu0 %v605
        %v639 = vpop.f32.mrf.mxu0
        %v640 = vadd.f32 0.0, %v639
        %641 = vdwg.mxu0
        %642 = vmatpush.msra.mxu0 0.0
        %643 = vmatpush.msra.mxu0 0.0
        %644 = vmatpush.msra.mxu0 0.0
        %645 = vmatpush.msra.mxu0 0.0
        %646 = vmatpush.msra.mxu0 0.0
        %647 = vmatpush.msra.mxu0 0.0
        %648 = vmatpush.msra.mxu0 0.0
        %649 = vmatpush.msra.mxu0 0.0
        %650 = vmatpush.msra.mxu0 0.0
        %651 = vmatpush.msra.mxu0 0.0
        %652 = vmatpush.msra.mxu0 0.0
        %653 = vmatpush.msra.mxu0 0.0
        %654 = vmatpush.msra.mxu0 0.0
        %655 = vmatpush.msra.mxu0 0.0
        %656 = vmatpush.msra.mxu0 %v611
        %657 = vmatpush.msra.mxu0 %v587
        %658 = vmatmul.f32.gmra.mxu0 %v596
        %v659 = vpop.f32.mrf.mxu0
        %v660 = vadd.f32 0.0, %v659
        %661 = vmatmul.f32.gmra.mxu0 %v599
        %v662 = vpop.f32.mrf.mxu0
        %v663 = vadd.f32 0.0, %v662
        %664 = vmatmul.f32.gmra.mxu0 %v602
        %v665 = vpop.f32.mrf.mxu0
        %v666 = vadd.f32 0.0, %v665
        %667 = vmatmul.f32.gmra.mxu0 %v605
        %v668 = vpop.f32.mrf.mxu0
        %v669 = vadd.f32 0.0, %v668
        %670 = vdwg.mxu0
        %v671 = vadd.f32 %v566, %v631
        %v672 = vadd.f32 %v567, %v660
        %v673 = vadd.f32 %v568, %v634
        %v674 = vadd.f32 %v569, %v663
        %v675 = vadd.f32 %v570, %v637
        %v676 = vadd.f32 %v571, %v666
        %v677 = vadd.f32 %v572, %v640
        %v678 = vadd.f32 %v573, %v669
        %s679 = scalar_lea.vmem %s269, 4
        %v680 = vld [vmem:[%s679] ss:$8 sm:$0x3]
        %v681 = vperm.slane %v680, 0
        %v682 = vperm.slane %v680, 1
        %vm683 = vcmp.eq.s32.totalorder %v273, %v681
        %vm684 = vcmp.eq.s32.totalorder %v273, %v682
        %vm685 = vcmp.eq.s32.totalorder %v274, %v681
        %vm686 = vcmp.eq.s32.totalorder %v274, %v682
        %v687 = vsel %vm683, 1, 0
        %v688 = vsel %vm684, 1, 0
        %v689 = vsel %vm685, 1, 0
        %v690 = vsel %vm686, 1, 0
        %v691 = vcvt.s32.f32 %v687
        %v692 = vcvt.s32.f32 %v688
        %v693 = vcvt.s32.f32 %v689
        %v694 = vcvt.s32.f32 %v690
        %s695 = scalar_lea.vmem %s1, 128
        %v696 = vld [vmem:[%s695] sm:$0xff]
        %v697 = vld [vmem:[%s695 + $0x8] sm:$0xff]
        %v698 = vld [vmem:[%s695 + $0x10] sm:$0xff]
        %v699 = vld [vmem:[%s695 + $0x18] sm:$0xff]
        %v701 = vsel %vm315, %v696, 0
        %v704 = vsel %vm315, %v697, 0
        %v707 = vsel %vm315, %v698, 0
        %v710 = vsel %vm315, %v699, 0
        %v713 = vsel %vm328, %v693, 0
        %v716 = vsel %vm328, %v694, 0
        %718 = vmatpush.msra.mxu0 0.0
        %719 = vmatpush.msra.mxu0 0.0
        %720 = vmatpush.msra.mxu0 0.0
        %721 = vmatpush.msra.mxu0 0.0
        %722 = vmatpush.msra.mxu0 0.0
        %723 = vmatpush.msra.mxu0 0.0
        %724 = vmatpush.msra.mxu0 0.0
        %725 = vmatpush.msra.mxu0 0.0
        %726 = vmatpush.msra.mxu0 0.0
        %727 = vmatpush.msra.mxu0 0.0
        %728 = vmatpush.msra.mxu0 0.0
        %729 = vmatpush.msra.mxu0 0.0
        %730 = vmatpush.msra.mxu0 0.0
        %731 = vmatpush.msra.mxu0 0.0
        %732 = vmatpush.msra.mxu0 %v713
        %733 = vmatpush.msra.mxu0 %v691
        %734 = vmatmul.f32.gmra.mxu0 %v701
        %v735 = vpop.f32.mrf.mxu0
        %v736 = vadd.f32 0.0, %v735
        %737 = vmatmul.f32.gmra.mxu0 %v704
        %v738 = vpop.f32.mrf.mxu0
        %v739 = vadd.f32 0.0, %v738
        %740 = vmatmul.f32.gmra.mxu0 %v707
        %v741 = vpop.f32.mrf.mxu0
        %v742 = vadd.f32 0.0, %v741
        %743 = vmatmul.f32.gmra.mxu0 %v710
        %v744 = vpop.f32.mrf.mxu0
        %v745 = vadd.f32 0.0, %v744
        %746 = vdwg.mxu0
        %747 = vmatpush.msra.mxu0 0.0
        %748 = vmatpush.msra.mxu0 0.0
        %749 = vmatpush.msra.mxu0 0.0
        %750 = vmatpush.msra.mxu0 0.0
        %751 = vmatpush.msra.mxu0 0.0
        %752 = vmatpush.msra.mxu0 0.0
        %753 = vmatpush.msra.mxu0 0.0
        %754 = vmatpush.msra.mxu0 0.0
        %755 = vmatpush.msra.mxu0 0.0
        %756 = vmatpush.msra.mxu0 0.0
        %757 = vmatpush.msra.mxu0 0.0
        %758 = vmatpush.msra.mxu0 0.0
        %759 = vmatpush.msra.mxu0 0.0
        %760 = vmatpush.msra.mxu0 0.0
        %761 = vmatpush.msra.mxu0 %v716
        %762 = vmatpush.msra.mxu0 %v692
        %763 = vmatmul.f32.gmra.mxu0 %v701
        %v764 = vpop.f32.mrf.mxu0
        %v765 = vadd.f32 0.0, %v764
        %766 = vmatmul.f32.gmra.mxu0 %v704
        %v767 = vpop.f32.mrf.mxu0
        %v768 = vadd.f32 0.0, %v767
        %769 = vmatmul.f32.gmra.mxu0 %v707
        %v770 = vpop.f32.mrf.mxu0
        %v771 = vadd.f32 0.0, %v770
        %772 = vmatmul.f32.gmra.mxu0 %v710
        %v773 = vpop.f32.mrf.mxu0
        %v774 = vadd.f32 0.0, %v773
        %775 = vdwg.mxu0
        %v776 = vadd.f32 %v671, %v736
        %v777 = vadd.f32 %v672, %v765
        %v778 = vadd.f32 %v673, %v739
        %v779 = vadd.f32 %v674, %v768
        %v780 = vadd.f32 %v675, %v742
        %v781 = vadd.f32 %v676, %v771
        %v782 = vadd.f32 %v677, %v745
        %v783 = vadd.f32 %v678, %v774
        %s784 = scalar_lea.vmem %s269, 5
        %v785 = vld [vmem:[%s784] ss:$8 sm:$0x3]
        %v786 = vperm.slane %v785, 0
        %v787 = vperm.slane %v785, 1
        %vm788 = vcmp.eq.s32.totalorder %v273, %v786
        %vm789 = vcmp.eq.s32.totalorder %v273, %v787
        %vm790 = vcmp.eq.s32.totalorder %v274, %v786
        %vm791 = vcmp.eq.s32.totalorder %v274, %v787
        %v792 = vsel %vm788, 1, 0
        %v793 = vsel %vm789, 1, 0
        %v794 = vsel %vm790, 1, 0
        %v795 = vsel %vm791, 1, 0
        %v796 = vcvt.s32.f32 %v792
        %v797 = vcvt.s32.f32 %v793
        %v798 = vcvt.s32.f32 %v794
        %v799 = vcvt.s32.f32 %v795
        %s800 = scalar_lea.vmem %s1, 160
        %v801 = vld [vmem:[%s800] sm:$0xff]
        %v802 = vld [vmem:[%s800 + $0x8] sm:$0xff]
        %v803 = vld [vmem:[%s800 + $0x10] sm:$0xff]
        %v804 = vld [vmem:[%s800 + $0x18] sm:$0xff]
        %v806 = vsel %vm315, %v801, 0
        %v809 = vsel %vm315, %v802, 0
        %v812 = vsel %vm315, %v803, 0
        %v815 = vsel %vm315, %v804, 0
        %v818 = vsel %vm328, %v798, 0
        %v821 = vsel %vm328, %v799, 0
        %823 = vmatpush.msra.mxu0 0.0
        %824 = vmatpush.msra.mxu0 0.0
        %825 = vmatpush.msra.mxu0 0.0
        %826 = vmatpush.msra.mxu0 0.0
        %827 = vmatpush.msra.mxu0 0.0
        %828 = vmatpush.msra.mxu0 0.0
        %829 = vmatpush.msra.mxu0 0.0
        %830 = vmatpush.msra.mxu0 0.0
        %831 = vmatpush.msra.mxu0 0.0
        %832 = vmatpush.msra.mxu0 0.0
        %833 = vmatpush.msra.mxu0 0.0
        %834 = vmatpush.msra.mxu0 0.0
        %835 = vmatpush.msra.mxu0 0.0
        %836 = vmatpush.msra.mxu0 0.0
        %837 = vmatpush.msra.mxu0 %v818
        %838 = vmatpush.msra.mxu0 %v796
        %839 = vmatmul.f32.gmra.mxu0 %v806
        %v840 = vpop.f32.mrf.mxu0
        %v841 = vadd.f32 0.0, %v840
        %842 = vmatmul.f32.gmra.mxu0 %v809
        %v843 = vpop.f32.mrf.mxu0
        %v844 = vadd.f32 0.0, %v843
        %845 = vmatmul.f32.gmra.mxu0 %v812
        %v846 = vpop.f32.mrf.mxu0
        %v847 = vadd.f32 0.0, %v846
        %848 = vmatmul.f32.gmra.mxu0 %v815
        %v849 = vpop.f32.mrf.mxu0
        %v850 = vadd.f32 0.0, %v849
        %851 = vdwg.mxu0
        %852 = vmatpush.msra.mxu0 0.0
        %853 = vmatpush.msra.mxu0 0.0
        %854 = vmatpush.msra.mxu0 0.0
        %855 = vmatpush.msra.mxu0 0.0
        %856 = vmatpush.msra.mxu0 0.0
        %857 = vmatpush.msra.mxu0 0.0
        %858 = vmatpush.msra.mxu0 0.0
        %859 = vmatpush.msra.mxu0 0.0
        %860 = vmatpush.msra.mxu0 0.0
        %861 = vmatpush.msra.mxu0 0.0
        %862 = vmatpush.msra.mxu0 0.0
        %863 = vmatpush.msra.mxu0 0.0
        %864 = vmatpush.msra.mxu0 0.0
        %865 = vmatpush.msra.mxu0 0.0
        %866 = vmatpush.msra.mxu0 %v821
        %867 = vmatpush.msra.mxu0 %v797
        %868 = vmatmul.f32.gmra.mxu0 %v806
        %v869 = vpop.f32.mrf.mxu0
        %v870 = vadd.f32 0.0, %v869
        %871 = vmatmul.f32.gmra.mxu0 %v809
        %v872 = vpop.f32.mrf.mxu0
        %v873 = vadd.f32 0.0, %v872
        %874 = vmatmul.f32.gmra.mxu0 %v812
        %v875 = vpop.f32.mrf.mxu0
        %v876 = vadd.f32 0.0, %v875
        %877 = vmatmul.f32.gmra.mxu0 %v815
        %v878 = vpop.f32.mrf.mxu0
        %v879 = vadd.f32 0.0, %v878
        %880 = vdwg.mxu0
        %v881 = vadd.f32 %v776, %v841
        %v882 = vadd.f32 %v777, %v870
        %v883 = vadd.f32 %v778, %v844
        %v884 = vadd.f32 %v779, %v873
        %v885 = vadd.f32 %v780, %v847
        %v886 = vadd.f32 %v781, %v876
        %v887 = vadd.f32 %v782, %v850
        %v888 = vadd.f32 %v783, %v879
        %v889 = vld [vmem:[%s0] sm:$0x1]
        %v891 = vperm.slane %v889, 0
        %892 = vset.pattern.permute.xlu0 0
        %893 = vperm.xlu0 %892, %v891
        %v894 = vpop.permute.xlu0 %893
        %v896 = vadd.f32 %v881, %v894
        %v897 = vadd.f32 %v882, %v894
        %v898 = vadd.f32 %v883, %v894
        %v899 = vadd.f32 %v884, %v894
        %v900 = vadd.f32 %v885, %v894
        %v901 = vadd.f32 %v886, %v894
        %v902 = vadd.f32 %v887, %v894
        %v903 = vadd.f32 %v888, %v894
        %v904 = vmax.f32 %v896, 0.0
        %v905 = vmax.f32 %v897, 0.0
        %v906 = vmax.f32 %v898, 0.0
        %v907 = vmax.f32 %v899, 0.0
        %v908 = vmax.f32 %v900, 0.0
        %v909 = vmax.f32 %v901, 0.0
        %v910 = vmax.f32 %v902, 0.0
        %v911 = vmax.f32 %v903, 0.0
        %v912 = vld [vmem:[%s2] sm:$0xff]
        %v913 = vld [vmem:[%s2 + $0x8] sm:$0xff]
        %914 = vset.pattern.permute.xlu0 1
        %915 = vperm.xlu0 %914, %v891
        %v916 = vpop.permute.xlu0 %915
        %vm918 = vcmask 261120
        %v920 = vsel %vm918, %v912, 0
        %v923 = vsel %vm918, %v913, 0
        %925 = vmatpush.msra.mxu0 0.0
        %926 = vmatpush.msra.mxu0 0.0
        %927 = vmatpush.msra.mxu0 0.0
        %928 = vmatpush.msra.mxu0 0.0
        %929 = vmatpush.msra.mxu0 0.0
        %930 = vmatpush.msra.mxu0 0.0
        %931 = vmatpush.msra.mxu0 0.0
        %932 = vmatpush.msra.mxu0 0.0
        %933 = vmatpush.msra.mxu0 0.0
        %934 = vmatpush.msra.mxu0 0.0
        %935 = vmatpush.msra.mxu0 0.0
        %936 = vmatpush.msra.mxu0 0.0
        %937 = vmatpush.msra.mxu0 %v910
        %938 = vmatpush.msra.mxu0 %v908
        %939 = vmatpush.msra.mxu0 %v906
        %940 = vmatpush.msra.mxu0 %v904
        %941 = vmatmul.f32.gmra.mxu0 %v920
        %v942 = vpop.f32.mrf.mxu0
        %v943 = vadd.f32 %v916, %v942
        %944 = vmatmul.f32.gmra.mxu0 %v923
        %v945 = vpop.f32.mrf.mxu0
        %v946 = vadd.f32 %v916, %v945
        %947 = vdwg.mxu0
        %948 = vmatpush.msra.mxu0 0.0
        %949 = vmatpush.msra.mxu0 0.0
        %950 = vmatpush.msra.mxu0 0.0
        %951 = vmatpush.msra.mxu0 0.0
        %952 = vmatpush.msra.mxu0 0.0
        %953 = vmatpush.msra.mxu0 0.0
        %954 = vmatpush.msra.mxu0 0.0
        %955 = vmatpush.msra.mxu0 0.0
        %956 = vmatpush.msra.mxu0 0.0
        %957 = vmatpush.msra.mxu0 0.0
        %958 = vmatpush.msra.mxu0 0.0
        %959 = vmatpush.msra.mxu0 0.0
        %960 = vmatpush.msra.mxu0 %v911
        %961 = vmatpush.msra.mxu0 %v909
        %962 = vmatpush.msra.mxu0 %v907
        %963 = vmatpush.msra.mxu0 %v905
        %964 = vmatmul.f32.gmra.mxu0 %v920
        %v965 = vpop.f32.mrf.mxu0
        %v966 = vadd.f32 %v916, %v965
        %967 = vmatmul.f32.gmra.mxu0 %v923
        %v968 = vpop.f32.mrf.mxu0
        %v969 = vadd.f32 %v916, %v968
        %970 = vdwg.mxu0
        %v971 = vmax.f32 %v943, 0.0
        %v972 = vmax.f32 %v966, 0.0
        %v973 = vmax.f32 %v946, 0.0
        %v974 = vmax.f32 %v969, 0.0
        %v975 = vld [vmem:[%s3] sm:$0xff]
        %v976 = vld [vmem:[%s3 + $0x8] sm:$0xff]
        %978 = vset.pattern.permute.xlu0 0
        %979 = vperm.xlu0 %978, %v975
        %v980 = vpop.permute.xlu0 %979
        %983 = vset.pattern.permute.xlu0 0
        %984 = vperm.xlu0 %983, %v976
        %v985 = vpop.permute.xlu0 %984
        %v987 = vmul.f32 %v980, %v971
        %v988 = vmul.f32 %v980, %v972
        %v989 = vmul.f32 %v985, %v973
        %v990 = vmul.f32 %v985, %v974
        %v991 = vadd.f32 %v987, %v989
        %v992 = vrot.slane %v991, 4
        %v993 = vadd.f32 %v991, %v992
        %v994 = vrot.slane %v993, 2
        %v995 = vadd.f32 %v993, %v994
        %v996 = vrot.slane %v995, 1
        %v997 = vadd.f32 %v995, %v996
        %v998 = vadd.f32 %v988, %v990
        %v999 = vrot.slane %v998, 4
        %v1000 = vadd.f32 %v998, %v999
        %v1001 = vrot.slane %v1000, 2
        %v1002 = vadd.f32 %v1000, %v1001
        %v1003 = vrot.slane %v1002, 1
        %v1004 = vadd.f32 %v1002, %v1003
        %1005 = vset.pattern.permute.xlu0 2
        %1006 = vperm.xlu0 %1005, %v889
        %v1007 = vpop.permute.xlu0 %1006
        %v1009 = vperm.slane %v1007, 0
        %v1010 = vadd.f32 %v997, %v1009
        %v1011 = vadd.f32 %v1004, %v1009
        %v1012 = vmax.f32 %v1010, 0.0
        %v1013 = vmax.f32 %v1011, 0.0
        %v1014 = vld [vmem:[%s263] sm:$0x3]
        %v1017 = vrot.slane %v1013, 7
        %vm1018 = vcmask 1040384
        %v1019 = vsel %vm1018, %v1012, %v1017
        %v1021 = vadd.f32 %v1014, %v1019
        %v1022 = vxor.u32 %v1021, 2147483648
        %v1023 = vmul.f32 %v1022, 1.442695
        %v1024 = vpow.pop %v1023
        %v1025 = vadd.f32 %v1024, 1.0
        %v1026 = vrcp.pop %v1025
        %v1027 = vmul.f32 %v1025, %v1026
        %v1028 = vsub.f32 1.0, %v1027
        %v1029 = vmul.f32 %v1026, %v1028
        %v1030 = vadd.f32 %v1026, %v1029
        %vm1031 = vweird.f32 %v1025
        %vm1032 = vweird.f32 %v1026
        %vm1033 = vmor %vm1031, %vm1032
        %v1034 = vsel %vm1033, %v1026, %v1030
        %v1035 = vand.u32 2147483647, %v1025
        %vm1036 = vcmp.eq.f32.partialorder %v1035, 8.507059e+37
        %v1037 = vand.u32 %v1025, 2147483648
        %v1038 = vor.u32 1.1754944e-38, %v1037
        %v1039 = vsel %vm1036, %v1038, %v1034
        %v1040 = vmul.f32 1.0, %v1039
        %v1041 = vlaneseq
        %vm1042 = vcmp.ge.s32.totalorder %v1041, 0
        %vm1043 = vcmp.lt.s32.totalorder %v1041, 256
        %vm1044 = vmand %vm1042, %vm1043
        %1045 = vst.msk [vmem:[%s259] sm:$0x3] %vm1044, %v1040
        %s1046 = sand.u32 %s164, 1
        %s1047 = scalar_lea.sflag [#allocation3], %s1046
        %s1048 = sand.u32 %s164, 1
        %s1049 = smul.addr %s1048, 2
        %s1050 = scalar_lea.vmem [#allocation2], %s1049
        // Predicated region
        $region45: #{tpu_custom_call.1} parent=43 // pred_check
          %p1051 = pneg %p174
        $region46: #{tpu_custom_call.1} parent=43 // pred_check_branch
          %1053 = sbr.rel (%p1051) target = $region48
        $region47: #{tpu_custom_call.1} parent=43 // pred_region
          %s1054 = smul.u32 2, %s20
          %1056 = vsyncadd %s1047, 0
          %s1057 = scalar_lea.hbm %s6, %s1054
          %s1059 = sshll.u32 %s1050, 4
          %s1060 = int_to_ptr.vmem [resolvable:$true] %s1059
          %s1061 = sshll.u32 %s1057, 4
          %s1062 = int_to_ptr.hbm [resolvable:$true] %s1061
          %1064 = dma.vmem_to_hbm [thread:$0]  %s1060, 32, %s1062, %s1047
        $region48: #{tpu_custom_call.1} parent=43 // pred_fallthru
          _
      $region44: #{tpu_custom_call.1} parent=5 // pred_fallthru
        _
      %p1065 = scmp.le.s32.totalorder 2, %s15
      // Predicated region
      $region49: #{tpu_custom_call.1} parent=5 // pred_check
        %p1066 = pneg %p1065
      $region50: #{tpu_custom_call.1} parent=5 // pred_check_branch
        %1068 = sbr.rel (%p1066) target = $region52
      $region51: #{tpu_custom_call.1} parent=5 // pred_region
        %s1069 = ssub.s32 %s15, 2
        // Predicated region
        $region53: #{tpu_custom_call.1} parent=51 // pred_check
          %p1070 = pneg %p180
        $region54: #{tpu_custom_call.1} parent=51 // pred_check_branch
          %1072 = sbr.rel (%p1070) target = $region56
        $region55: #{tpu_custom_call.1} parent=51 // pred_region
          %s1073 = sand.u32 %s165, 1
          %s1074 = scalar_lea.sflag [#allocation3], %s1073
          %s1075 = sand.u32 %s165, 1
          %s1076 = smul.addr %s1075, 2
          %s1077 = scalar_lea.vmem [#allocation2], %s1076
          %1079 = dma.done %s1074, 32
        $region56: #{tpu_custom_call.1} parent=51 // pred_fallthru
          _
      $region52: #{tpu_custom_call.1} parent=5 // pred_fallthru
        _
    $region6: #{tpu_custom_call.1} parent=1 // loop_footer
      %s19 = sadd.s32 1, %s15
    $region7: #{tpu_custom_call.1} parent=1 // loop_footer_branch
      %14 = sbr.rel target = $region3
    $region8: #{tpu_custom_call.1} parent=1 // loop_exit
      _
    %1080 = vsyncpa [#allocation3], 1
    %s1081 = scalar_lea.sflag [#allocation3], 1
    %1082 = vsyncpa %s1081, 1

</llo_original>
